<compile_context>
chip_gen: v7x
topology: tpu7x:2x2x1
jax: 0.10.0
libtpu: 0.0.40
codegen_flags: <defaults>
</compile_context>

<pallas_src>
import jax
import jax.numpy as jnp
from jax.experimental import pallas as pl
from jax.experimental.pallas import tpu as pltpu


def _modulate_kernel(shift_ref, scale1_ref, x_ref, o_ref):
    # shift_ref / scale1_ref: (1, Hp) -- resident across all sequence tiles.
    # x_ref / o_ref:          (tn, Hp) (leading batch dim squeezed away).
    x = x_ref[...].astype(scale1_ref.dtype)
    o_ref[...] = (x * scale1_ref[...] + shift_ref[...]).astype(o_ref.dtype)


def _tpu_generation():
    """Best-effort TPU generation: 5 / 6 / 7, or 0 if unknown (conservative)."""
    try:
        kind = jax.devices()[0].device_kind.lower()
    except Exception:
        return 0
    if "v7" in kind:
        return 7
    if "v6" in kind:
        return 6
    if "v5" in kind:
        return 5
    return 0


def _round_up(v, m):
    return -(-v // m) * m


def _pick_seq_tile(N, B, Hp, itemsize, gen):
    """Sequence-tile rows: generation-specific byte target, multiple of 8/16."""
    min_mult = 16 if itemsize < 4 else 8
    target_bytes = {5: 2 << 20, 6: 4 << 20, 7: 6 << 20}.get(gen, 2 << 20)
    tn = max(min_mult, (target_bytes // max(1, Hp * itemsize)) // min_mult * min_mult)
    if tn >= N:
        tn = N  # full extent: always a legal block shape
    # v7x: 2 TensorCores share the chip -- bias the total grid step count
    # (B * num_seq_tiles) to be even so neither core idles on the tail.
    if gen == 7 and B % 2 == 1:
        if tn == N and N > min_mult:
            half = _round_up(_round_up(N, 2) // 2, min_mult)
            if half < N:
                tn = half
        elif tn < N:
            while (N + tn - 1) // tn % 2 == 1 and tn > min_mult:
                tn -= min_mult
    return tn


def adaln_zero(x, condition, weight, bias):
    """x: (B, N, H); condition: (B, C); weight: (2H, C); bias: (2H,)."""
    B, N, H = x.shape
    gen = _tpu_generation()
    itemsize = jnp.dtype(x.dtype).itemsize

    # --- Hoisted SiLU + zero-init Linear: one small XLA GEMM in f32. ---
    cond = condition.astype(jnp.float32)
    cond_emb = cond * jax.nn.sigmoid(cond)                            # SiLU
    out = cond_emb @ weight.astype(jnp.float32).T + bias.astype(jnp.float32)
    shift = out[:, :H]                                                # (B, H)
    scale1 = out[:, H:] + 1.0                                         # (B, H), folded "+1"

    # bf16 modulate on v6e/v7x (native bf16 VPU); keep f32 on v5e / unknown.
    compute_dtype = x.dtype if (x.dtype == jnp.bfloat16 and gen >= 6) else jnp.float32
    shift = shift.astype(compute_dtype)
    scale1 = scale1.astype(compute_dtype)

    # --- Lane-dense guarantee: pad hidden dim to a multiple of 128. ---
    # Production DiT hidden dims are already 128-aligned; this pad only fires
    # for odd test shapes and is sliced off after the kernel.
    Hp = _round_up(H, 128)
    x_k = x
    if Hp != H:
        x_k = jnp.pad(x, ((0, 0), (0, 0), (0, Hp - H)))
        shift = jnp.pad(shift, ((0, 0), (0, Hp - H)))
        scale1 = jnp.pad(scale1, ((0, 0), (0, Hp - H)))

    # Give shift/scale1 a unit "sequence" axis so their block shapes' trailing
    # two dims (1, Hp) equal the full array dims (always-legal layout).
    shift = shift[:, None, :]                                         # (B, 1, Hp)
    scale1 = scale1[:, None, :]                                       # (B, 1, Hp)

    # --- Pallas modulate kernel, gridded over (batch, sequence tiles). ---
    tn = _pick_seq_tile(N, B, Hp, itemsize, gen)
    grid = (B, pl.cdiv(N, tn))

    cost = pl.CostEstimate(
        flops=2 * B * N * Hp,
        transcendentals=0,
        bytes_accessed=2 * B * N * Hp * itemsize
        + 2 * B * Hp * jnp.dtype(compute_dtype).itemsize,
    )

    compiler_kwargs = dict(dimension_semantics=("parallel", "parallel"))
    if gen == 7:
        # 4 x ~6 MiB double-buffered tiles exceed v7x's 32 MiB scoped default
        # but sit well inside its 64 MiB physical VMEM.
        compiler_kwargs["vmem_limit_bytes"] = 48 * 1024 * 1024

    y = pl.pallas_call(
        _modulate_kernel,
        out_shape=jax.ShapeDtypeStruct((B, N, Hp), x.dtype),
        grid_spec=pltpu.PrefetchScalarGridSpec(
            num_scalar_prefetch=0,
            grid=grid,
            in_specs=[
                pl.BlockSpec((pl.Squeezed(), 1, Hp), lambda b, n: (b, 0, 0)),   # shift
                pl.BlockSpec((pl.Squeezed(), 1, Hp), lambda b, n: (b, 0, 0)),   # scale+1
                pl.BlockSpec((pl.Squeezed(), tn, Hp), lambda b, n: (b, n, 0)),  # x
            ],
            out_specs=pl.BlockSpec((pl.Squeezed(), tn, Hp), lambda b, n: (b, n, 0)),
        ),
        compiler_params=pltpu.CompilerParams(**compiler_kwargs),
        cost_estimate=cost,
    )(shift, scale1, x_k)

    if Hp != H:
        y = y[..., :H]
    return y


def _reference(x, condition, weight, bias):
    cond_emb = condition * jax.nn.sigmoid(condition)
    out = cond_emb @ weight.T + bias
    H = x.shape[-1]
    shift, scale = out[:, :H], out[:, H:]
    return x * (1.0 + scale[:, None, :]) + shift[:, None, :]


if __name__ == "__main__":
    B, N = 2, 8            # batch, sequence length
    hidden_dim = 32
    condition_dim = 16

    key = jax.random.PRNGKey(0)
    kx, kc, kb, kx2, kc2, kw2 = jax.random.split(key, 6)

    x = jax.random.normal(kx, (B, N, hidden_dim), dtype=jnp.float32)
    condition = jax.random.normal(kc, (B, condition_dim), dtype=jnp.float32)

    # Parameters mirroring nn.Linear(condition_dim, 2*hidden_dim):
    #   weight zero-initialized (nn.init.zeros_), bias uniform(-1/sqrt(C), 1/sqrt(C)).
    weight = jnp.zeros((2 * hidden_dim, condition_dim), dtype=jnp.float32)
    bound = 1.0 / (condition_dim ** 0.5)
    bias = jax.random.uniform(kb, (2 * hidden_dim,), dtype=jnp.float32,
                              minval=-bound, maxval=bound)

    y = adaln_zero(x, condition, weight, bias)
    jax.block_until_ready(y)
    y_ref = _reference(x, condition, weight, bias)
    assert jnp.allclose(y, y_ref, atol=1e-5, rtol=1e-5), "f32 mismatch vs reference"

    # Second check: 128-aligned hidden dim + bf16 activations (lane-dense path,
    # and the native-bf16 modulate path on v6e/v7x).
    H2, C2, N2 = 128, 64, 16
    x2 = jax.random.normal(kx2, (B, N2, H2), dtype=jnp.bfloat16)
    cond2 = jax.random.normal(kc2, (B, C2), dtype=jnp.float32)
    w2 = jax.random.normal(kw2, (2 * H2, C2), dtype=jnp.float32) * 0.02
    b2 = jnp.zeros((2 * H2,), dtype=jnp.float32)
    y2 = adaln_zero(x2, cond2, w2, b2)
    jax.block_until_ready(y2)
    y2_ref = _reference(x2.astype(jnp.float32), cond2, w2, b2)
    assert jnp.allclose(y2.astype(jnp.float32), y2_ref, atol=3e-2, rtol=3e-2), \
        "bf16 mismatch vs reference"

    print("KERNEL_OK")
</pallas_src>

<mosaic_0001>
module attributes {stable_mosaic.version = 11 : i64} {
  func.func @_modulate_kernel(%arg0: i32, %arg1: i32, %arg2: memref<1x1x128xf32, #tpu.memory_space<vmem>>, %arg3: memref<1x1x128xf32, #tpu.memory_space<vmem>>, %arg4: memref<1x8x128xf32, #tpu.memory_space<vmem>>, %arg5: memref<1x8x128xf32, #tpu.memory_space<vmem>>) attributes {dimension_semantics = [#tpu.dimension_semantics<parallel>, #tpu.dimension_semantics<parallel>], iteration_bounds = array<i64: 2, 1>, scalar_prefetch = 0 : i64, scratch_operands = 0 : i64, tpu.core_type = #tpu.core_type<tc>, window_params = [{transform_indices = @transform_0, window_bounds = array<i64: 1, 1, 128>}, {transform_indices = @transform_1, window_bounds = array<i64: 1, 1, 128>}, {transform_indices = @transform_2, window_bounds = array<i64: 1, 8, 128>}, {transform_indices = @transform_3, window_bounds = array<i64: 1, 8, 128>}]} {
    %c0 = arith.constant 0 : index
    %c0_0 = arith.constant 0 : index
    %c0_1 = arith.constant 0 : index
    %0 = vector.load %arg4[%c0, %c0_0, %c0_1] : memref<1x8x128xf32, #tpu.memory_space<vmem>>, vector<1x8x128xf32>
    %1 = vector.shape_cast %0 : vector<1x8x128xf32> to vector<8x128xf32>
    %c0_2 = arith.constant 0 : index
    %c0_3 = arith.constant 0 : index
    %c0_4 = arith.constant 0 : index
    %2 = vector.load %arg3[%c0_2, %c0_3, %c0_4] : memref<1x1x128xf32, #tpu.memory_space<vmem>>, vector<1x1x128xf32>
    %3 = vector.shape_cast %2 : vector<1x1x128xf32> to vector<1x128xf32>
    %4 = vector.broadcast %3 : vector<1x128xf32> to vector<8x128xf32>
    %5 = arith.mulf %1, %4 : vector<8x128xf32>
    %c0_5 = arith.constant 0 : index
    %c0_6 = arith.constant 0 : index
    %c0_7 = arith.constant 0 : index
    %6 = vector.load %arg2[%c0_5, %c0_6, %c0_7] : memref<1x1x128xf32, #tpu.memory_space<vmem>>, vector<1x1x128xf32>
    %7 = vector.shape_cast %6 : vector<1x1x128xf32> to vector<1x128xf32>
    %8 = vector.broadcast %7 : vector<1x128xf32> to vector<8x128xf32>
    %9 = arith.addf %5, %8 : vector<8x128xf32>
    %c0_8 = arith.constant 0 : index
    %c0_9 = arith.constant 0 : index
    %c0_10 = arith.constant 0 : index
    %10 = vector.load %arg5[%c0_8, %c0_9, %c0_10] : memref<1x8x128xf32, #tpu.memory_space<vmem>>, vector<1x8x128xf32>
    %11 = vector.shape_cast %10 : vector<1x8x128xf32> to vector<8x128xf32>
    %12 = vector.shape_cast %9 : vector<8x128xf32> to vector<1x8x128xf32>
    tpu.vector_store %arg5[%c0_8, %c0_9, %c0_10], %12 {strides = array<i32>} : memref<1x8x128xf32, #tpu.memory_space<vmem>>, vector<1x8x128xf32>,
    return
  }
  func.func @transform_0(%arg0: i32, %arg1: i32) -> (i32, i32, i32) {
    %c0_i32 = arith.constant 0 : i32
    %c0_i32_0 = arith.constant 0 : i32
    %c0_i32_1 = arith.constant 0 : i32
    return %arg0, %c0_i32, %c0_i32_0 : i32, i32, i32
  }
  func.func @transform_1(%arg0: i32, %arg1: i32) -> (i32, i32, i32) {
    %c0_i32 = arith.constant 0 : i32
    %c0_i32_0 = arith.constant 0 : i32
    %c0_i32_1 = arith.constant 0 : i32
    return %arg0, %c0_i32, %c0_i32_0 : i32, i32, i32
  }
  func.func @transform_2(%arg0: i32, %arg1: i32) -> (i32, i32, i32) {
    %c0_i32 = arith.constant 0 : i32
    %c0_i32_0 = arith.constant 0 : i32
    return %arg0, %arg1, %c0_i32 : i32, i32, i32
  }
  func.func @transform_3(%arg0: i32, %arg1: i32) -> (i32, i32, i32) {
    %c0_i32 = arith.constant 0 : i32
    %c0_i32_0 = arith.constant 0 : i32
    return %arg0, %arg1, %c0_i32 : i32, i32, i32
  }
}

</mosaic_0001>

<llo_original>
// kernel: tpu_custom_call.1
$region0: #{tpu_custom_call.1}
  #allocation0 [shape = 'u32[]', space=smem, size = 0x4, offset = 0x4, fixed_abs, tag = 'smem constant byte address 0x4 - core index']
  #allocation1 [shape = 'u32[144,128]{1,0:T(1,128)}', space=vmem, size = 0x12000, scoped, tag = 'internal scratch']
  %s0 = inlined_call_operand.hbm [shape: f32[2,1,128], index: 0, kind: input, shape index: {}]
  %s1 = inlined_call_operand.vmem [shape: f32[2,1,128], index: 1, kind: input, shape index: {}]
  %s2 = inlined_call_operand.hbm [shape: f32[2,8,128], index: 2, kind: input, shape index: {}]
  %s3 = inlined_call_operand.hbm [shape: f32[2,8,128], index: 3, kind: output, shape index: {}]
  %s4 = sld [smem:[#allocation0]]
  $region53: #{tpu_custom_call.1} parent=0
    _
  %s6 = ssub.s32 1, %s4
  %s7 = scalar_select 0, %s6, %s4
  $region1: #{tpu_custom_call.1} parent=0
    #allocation2 [shape = 'u8[1024]{0}', space=vmem, size = 0x400, scoped, tag = 'input window, operand 0']
    #allocation3 [shape = 's32[2]{0}', space=sflag, size = 0x8, scoped, tag = 'scoped memory for tpu_custom_call.1']
    #allocation4 [shape = 's32[2]{0}', space=sflag, size = 0x8, scoped, tag = 'scoped memory for tpu_custom_call.1']
    #allocation5 [shape = 'u8[8192]{0}', space=vmem, size = 0x2000, scoped, tag = 'input window, operand 2']
    #allocation6 [shape = 's32[2]{0}', space=sflag, size = 0x8, scoped, tag = 'scoped memory for tpu_custom_call.1']
    #allocation7 [shape = 'u8[8192]{0}', space=vmem, size = 0x2000, scoped, tag = 'output window, operand 0']
    %8 = vsyncpa [#allocation3], 0
    %s9 = scalar_lea.sflag [#allocation3], 1
    %10 = vsyncpa %s9, 0
    %11 = vsyncpa [#allocation6], 0
    %s12 = scalar_lea.sflag [#allocation6], 1
    %13 = vsyncpa %s12, 0
    %14 = vsyncpa [#allocation4], 0
    %s15 = scalar_lea.sflag [#allocation4], 1
    %16 = vsyncpa %s15, 0
    loop: start=0, step=1, limit=4
    $region2: #{tpu_custom_call.1} parent=1 // loop_pre_header
      _
    $region3: #{tpu_custom_call.1} parent=1 // loop_header
      %s18 = sphi 0, %s22
      %p19 = scmp.ge.s32.totalorder %s18, 4
      %s25 = sphi 0, %s37
      %s26 = sphi 0, %s33
      %s27 = sphi 0, %s25
      %s28 = sphi 0, %s26
      %s29 = sphi 0, %s27
      %s30 = sphi 0, %s28
      %s40 = sphi 0, %s42
      %s43 = sphi 0, %s40
      %s44 = sphi 0, %s43
      %s60 = sphi 0, %s44
      %s66 = sphi 0, %s68
      %s69 = sphi 0, %s66
      %s70 = sphi 0, %s69
      %s86 = sphi 0, %s70
      %s94 = sphi 0, %s96
      %s97 = sphi 0, %s94
      %s98 = sphi 0, %s97
      %s114 = sphi 0, %s98
      %s122 = sphi 0, %s124
      %s125 = sphi 0, %s122
      %s126 = sphi 0, %s125
      %s142 = sphi 0, %s126
    $region4: #{tpu_custom_call.1} parent=1 // loop_header_branch
      %21 = sbr.rel (%p19) target = $region8
    $region5: #{tpu_custom_call.1} parent=1 // loop_body
      %s23 = ssub.s32 %s18, 1
      %s24 = ssub.s32 %s18, 2
      %s31 = sadd.s32 1, %s26
      %p32 = scmp.ge.s32.totalorder %s31, 1
      %s33 = scalar_select %p32, 0, %s31
      %s34 = sadd.s32 1, %s25
      %s35 = scalar_select %p32, %s34, %s25
      %p36 = scmp.ge.s32.totalorder %s35, 2
      %s37 = scalar_select %p36, 0, %s35
      %s38 = ssub.s32 %s25, %s37
      %p39 = scmp.eq.s32.totalorder %s38, 0
      %s41 = sadd.s32 %s40, 1
      %s42 = scalar_select %p39, %s40, %s41
      %p45 = pneg %p39
      %p46 = scmp.eq.s32.totalorder %s18, 1
      %p47 = por %p45, %p46
      %p48 = scmp.ne.s32.totalorder %s40, %s43
      %p49 = scmp.eq.s32.totalorder %s18, 0
      %p50 = por %p48, %p49
      %p51 = scmp.ne.s32.totalorder %s40, %s43
      %p52 = scmp.eq.s32.totalorder %s23, 1
      %p53 = por %p51, %p52
      %p54 = scmp.ne.s32.totalorder %s43, %s44
      %p55 = scmp.eq.s32.totalorder %s23, 0
      %p56 = por %p54, %p55
      %p57 = scmp.ne.s32.totalorder %s43, %s44
      %p58 = scmp.eq.s32.totalorder %s24, 1
      %p59 = por %p57, %p58
      %p61 = scmp.ne.s32.totalorder %s44, %s60
      %p62 = scmp.eq.s32.totalorder %s24, 0
      %p63 = por %p61, %p62
      %s64 = ssub.s32 %s25, %s37
      %p65 = scmp.eq.s32.totalorder %s64, 0
      %s67 = sadd.s32 %s66, 1
      %s68 = scalar_select %p65, %s66, %s67
      %p71 = pneg %p65
      %p72 = scmp.eq.s32.totalorder %s18, 1
      %p73 = por %p71, %p72
      %p74 = scmp.ne.s32.totalorder %s66, %s69
      %p75 = scmp.eq.s32.totalorder %s18, 0
      %p76 = por %p74, %p75
      %p77 = scmp.ne.s32.totalorder %s66, %s69
      %p78 = scmp.eq.s32.totalorder %s23, 1
      %p79 = por %p77, %p78
      %p80 = scmp.ne.s32.totalorder %s69, %s70
      %p81 = scmp.eq.s32.totalorder %s23, 0
      %p82 = por %p80, %p81
      %p83 = scmp.ne.s32.totalorder %s69, %s70
      %p84 = scmp.eq.s32.totalorder %s24, 1
      %p85 = por %p83, %p84
      %p87 = scmp.ne.s32.totalorder %s70, %s86
      %p88 = scmp.eq.s32.totalorder %s24, 0
      %p89 = por %p87, %p88
      %s90 = ssub.s32 %s25, %s37
      %s91 = ssub.s32 %s26, %s33
      %s92 = sor.u32 %s90, %s91
      %p93 = scmp.eq.s32.totalorder %s92, 0
      %s95 = sadd.s32 %s94, 1
      %s96 = scalar_select %p93, %s94, %s95
      %p99 = pneg %p93
      %p100 = scmp.eq.s32.totalorder %s18, 1
      %p101 = por %p99, %p100
      %p102 = scmp.ne.s32.totalorder %s94, %s97
      %p103 = scmp.eq.s32.totalorder %s18, 0
      %p104 = por %p102, %p103
      %p105 = scmp.ne.s32.totalorder %s94, %s97
      %p106 = scmp.eq.s32.totalorder %s23, 1
      %p107 = por %p105, %p106
      %p108 = scmp.ne.s32.totalorder %s97, %s98
      %p109 = scmp.eq.s32.totalorder %s23, 0
      %p110 = por %p108, %p109
      %p111 = scmp.ne.s32.totalorder %s97, %s98
      %p112 = scmp.eq.s32.totalorder %s24, 1
      %p113 = por %p111, %p112
      %p115 = scmp.ne.s32.totalorder %s98, %s114
      %p116 = scmp.eq.s32.totalorder %s24, 0
      %p117 = por %p115, %p116
      %s118 = ssub.s32 %s25, %s37
      %s119 = ssub.s32 %s26, %s33
      %s120 = sor.u32 %s118, %s119
      %p121 = scmp.eq.s32.totalorder %s120, 0
      %s123 = sadd.s32 %s122, 1
      %s124 = scalar_select %p121, %s122, %s123
      %p127 = pneg %p121
      %p128 = scmp.eq.s32.totalorder %s18, 1
      %p129 = por %p127, %p128
      %p130 = scmp.ne.s32.totalorder %s122, %s125
      %p131 = scmp.eq.s32.totalorder %s18, 0
      %p132 = por %p130, %p131
      %p133 = scmp.ne.s32.totalorder %s122, %s125
      %p134 = scmp.eq.s32.totalorder %s23, 1
      %p135 = por %p133, %p134
      %p136 = scmp.ne.s32.totalorder %s125, %s126
      %p137 = scmp.eq.s32.totalorder %s23, 0
      %p138 = por %p136, %p137
      %p139 = scmp.ne.s32.totalorder %s125, %s126
      %p140 = scmp.eq.s32.totalorder %s24, 1
      %p141 = por %p139, %p140
      %p143 = scmp.ne.s32.totalorder %s126, %s142
      %p144 = scmp.eq.s32.totalorder %s24, 0
      %p145 = por %p143, %p144
      %p146 = scmp.le.s32.totalorder 1, %s18
      %p147 = scmp.lt.s32.totalorder %s18, 3
      %p148 = pnand %p146, %p147
      %p149 = pneg %p148
      // Predicated region
      $region9: #{tpu_custom_call.1} parent=5 // pred_check
        _
      $region10: #{tpu_custom_call.1} parent=5 // pred_check_branch
        %151 = sbr.rel (%p148) target = $region12
      $region11: #{tpu_custom_call.1} parent=5 // pred_region
        %s152 = ssub.s32 %s18, 1
      $region12: #{tpu_custom_call.1} parent=5 // pred_fallthru
        _
      %p153 = scmp.lt.s32.totalorder %s18, 2
      // Predicated region
      $region13: #{tpu_custom_call.1} parent=5 // pred_check
        %p154 = pneg %p153
      $region14: #{tpu_custom_call.1} parent=5 // pred_check_branch
        %156 = sbr.rel (%p154) target = $region16
      $region15: #{tpu_custom_call.1} parent=5 // pred_region
        // Predicated region
        $region17: #{tpu_custom_call.1} parent=15 // pred_check
          %p157 = pneg %p50
        $region18: #{tpu_custom_call.1} parent=15 // pred_check_branch
          %159 = sbr.rel (%p157) target = $region20
        $region19: #{tpu_custom_call.1} parent=15 // pred_region
          %s160 = sand.u32 %s40, 1
          %s161 = scalar_lea.sflag [#allocation3], %s160
          %s162 = sand.u32 %s40, 1
          %s163 = scalar_lea.vmem [#allocation2], %s162
          %s165 = ssub.s32 16, 16
          %166 = vsyncadd %s161, %s165
          %s167 = smul.addr %s25, 16
          %s168 = scalar_lea.hbm %s0, %s167
          %s170 = sshll.u32 %s163, 4
          %s171 = int_to_ptr.vmem [resolvable:$true] %s170
          %173 = dma.hbm_to_vmem [thread:$0]  %s168, 16, %s171, %s161
        $region20: #{tpu_custom_call.1} parent=15 // pred_fallthru
          _
        // Predicated region
        $region21: #{tpu_custom_call.1} parent=15 // pred_check
          %p174 = pneg %p76
        $region22: #{tpu_custom_call.1} parent=15 // pred_check_branch
          %176 = sbr.rel (%p174) target = $region24
        $region23: #{tpu_custom_call.1} parent=15 // pred_region
          %p177 = scmp.lt.s32.totalorder %s25, 1
          %s178 = scalar_select %p177, %s25, 1
          %s179 = scalar_lea.vmem %s1, %s178
        $region24: #{tpu_custom_call.1} parent=15 // pred_fallthru
          _
        // Predicated region
        $region25: #{tpu_custom_call.1} parent=15 // pred_check
          %p180 = pneg %p104
        $region26: #{tpu_custom_call.1} parent=15 // pred_check_branch
          %182 = sbr.rel (%p180) target = $region28
        $region27: #{tpu_custom_call.1} parent=15 // pred_region
          %s183 = sand.u32 %s94, 1
          %s184 = scalar_lea.sflag [#allocation6], %s183
          %s185 = sand.u32 %s94, 1
          %s186 = smul.addr %s185, 8
          %s187 = scalar_lea.vmem [#allocation5], %s186
          %s189 = ssub.s32 128, 128
          %190 = vsyncadd %s184, %s189
          %s191 = sadd.s32 %s26, %s25
          %s192 = smul.addr %s191, 128
          %s193 = scalar_lea.hbm %s2, %s192
          %s195 = sshll.u32 %s187, 4
          %s196 = int_to_ptr.vmem [resolvable:$true] %s195
          %198 = dma.hbm_to_vmem [thread:$0]  %s193, 128, %s196, %s184
        $region28: #{tpu_custom_call.1} parent=15 // pred_fallthru
          _
      $region16: #{tpu_custom_call.1} parent=5 // pred_fallthru
        _
      %p199 = scmp.le.s32.totalorder 1, %s18
      %p200 = scmp.lt.s32.totalorder %s18, 3
      %p201 = pnand %p199, %p200
      %p202 = pneg %p201
      // Predicated region
      $region29: #{tpu_custom_call.1} parent=5 // pred_check
        _
      $region30: #{tpu_custom_call.1} parent=5 // pred_check_branch
        %204 = sbr.rel (%p201) target = $region32
      $region31: #{tpu_custom_call.1} parent=5 // pred_region
        %s205 = ssub.s32 %s18, 1
        %s206 = sand.u32 %s43, 1
        %s207 = scalar_lea.sflag [#allocation3], %s206
        %s208 = sand.u32 %s43, 1
        %s209 = scalar_lea.vmem [#allocation2], %s208
        // Predicated region
        $region33: #{tpu_custom_call.1} parent=31 // pred_check
          %p210 = pneg %p56
        $region34: #{tpu_custom_call.1} parent=31 // pred_check_branch
          %212 = sbr.rel (%p210) target = $region36
        $region35: #{tpu_custom_call.1} parent=31 // pred_region
          %213 = dma.done %s207, 16
        $region36: #{tpu_custom_call.1} parent=31 // pred_fallthru
          _
        %s214 = sand.u32 %s97, 1
        %s215 = scalar_lea.sflag [#allocation6], %s214
        %s216 = sand.u32 %s97, 1
        %s217 = smul.addr %s216, 8
        %s218 = scalar_lea.vmem [#allocation5], %s217
        // Predicated region
        $region37: #{tpu_custom_call.1} parent=31 // pred_check
          %p219 = pneg %p110
        $region38: #{tpu_custom_call.1} parent=31 // pred_check_branch
          %221 = sbr.rel (%p219) target = $region40
        $region39: #{tpu_custom_call.1} parent=31 // pred_region
          %222 = dma.done %s215, 128
        $region40: #{tpu_custom_call.1} parent=31 // pred_fallthru
          _
        %s223 = sand.u32 %s43, 1
        %s224 = scalar_lea.sflag [#allocation3], %s223
        %s225 = sand.u32 %s43, 1
        %s226 = scalar_lea.vmem [#allocation2], %s225
        %p227 = pneg %p56
        %p228 = pneg %p53
        %p229 = scmp.lt.s32.totalorder %s27, 1
        %s230 = scalar_select %p229, %s27, 1
        %s231 = scalar_lea.vmem %s1, %s230
        %p232 = pneg %p82
        %p233 = pneg %p79
        %s234 = sand.u32 %s97, 1
        %s235 = scalar_lea.sflag [#allocation6], %s234
        %s236 = sand.u32 %s97, 1
        %s237 = smul.addr %s236, 8
        %s238 = scalar_lea.vmem [#allocation5], %s237
        %p239 = pneg %p110
        %p240 = pneg %p107
        %p241 = pneg %p138
        %p242 = pneg %p135
        %s243 = sand.u32 %s125, 1
        %s244 = scalar_lea.sflag [#allocation4], %s243
        %s245 = sand.u32 %s125, 1
        %s246 = smul.addr %s245, 8
        %s247 = scalar_lea.vmem [#allocation7], %s246
        %p248 = scmp.lt.s32.totalorder %s27, 1
        %s249 = scalar_select %p248, %s27, 1
        %s250 = scalar_lea.vmem %s1, %s249
        %v251 = vld [vmem:[%s218] sm:$0xff]
        %v252 = vld [vmem:[%s250] sm:$0x1]
        %v254 = vlaneseq
        %v255 = vshrl.u32 %v254, 7
        %v256 = vsub.s32 0, %v255
        %v257 = vrot.slane %v252, %v256
        %v259 = vmul.f32 %v251, %v257
        %v260 = vld [vmem:[%s209] sm:$0x1]
        %v262 = vlaneseq
        %v263 = vshrl.u32 %v262, 7
        %v264 = vsub.s32 0, %v263
        %v265 = vrot.slane %v260, %v264
        %v267 = vadd.f32 %v259, %v265
        %268 = vst [vmem:[%s247] sm:$0xff] %v267
        %s269 = sand.u32 %s125, 1
        %s270 = scalar_lea.sflag [#allocation4], %s269
        %s271 = sand.u32 %s125, 1
        %s272 = smul.addr %s271, 8
        %s273 = scalar_lea.vmem [#allocation7], %s272
        // Predicated region
        $region41: #{tpu_custom_call.1} parent=31 // pred_check
          %p274 = pneg %p135
        $region42: #{tpu_custom_call.1} parent=31 // pred_check_branch
          %276 = sbr.rel (%p274) target = $region44
        $region43: #{tpu_custom_call.1} parent=31 // pred_region
          %s278 = ssub.s32 128, 128
          %279 = vsyncadd %s270, %s278
          %s280 = sadd.s32 %s28, %s27
          %s281 = smul.addr %s280, 128
          %s282 = scalar_lea.hbm %s3, %s281
          %s284 = sshll.u32 %s273, 4
          %s285 = int_to_ptr.vmem [resolvable:$true] %s284
          %287 = dma.vmem_to_hbm [thread:$0]  %s285, 128, %s282, %s270
        $region44: #{tpu_custom_call.1} parent=31 // pred_fallthru
          _
      $region32: #{tpu_custom_call.1} parent=5 // pred_fallthru
        _
      %p288 = scmp.le.s32.totalorder 2, %s18
      // Predicated region
      $region45: #{tpu_custom_call.1} parent=5 // pred_check
        %p289 = pneg %p288
      $region46: #{tpu_custom_call.1} parent=5 // pred_check_branch
        %291 = sbr.rel (%p289) target = $region48
      $region47: #{tpu_custom_call.1} parent=5 // pred_region
        %s292 = ssub.s32 %s18, 2
        // Predicated region
        $region49: #{tpu_custom_call.1} parent=47 // pred_check
          %p293 = pneg %p141
        $region50: #{tpu_custom_call.1} parent=47 // pred_check_branch
          %295 = sbr.rel (%p293) target = $region52
        $region51: #{tpu_custom_call.1} parent=47 // pred_region
          %s296 = sand.u32 %s126, 1
          %s297 = scalar_lea.sflag [#allocation4], %s296
          %s298 = sand.u32 %s126, 1
          %s299 = smul.addr %s298, 8
          %s300 = scalar_lea.vmem [#allocation7], %s299
          %301 = dma.done %s297, 128
        $region52: #{tpu_custom_call.1} parent=47 // pred_fallthru
          _
      $region48: #{tpu_custom_call.1} parent=5 // pred_fallthru
        _
    $region6: #{tpu_custom_call.1} parent=1 // loop_footer
      %s22 = sadd.s32 1, %s18
    $region7: #{tpu_custom_call.1} parent=1 // loop_footer_branch
      %17 = sbr.rel target = $region3
    $region8: #{tpu_custom_call.1} parent=1 // loop_exit
      _
    %302 = vsyncpa [#allocation3], 1
    %s303 = scalar_lea.sflag [#allocation3], 1
    %304 = vsyncpa %s303, 1
    %305 = vsyncpa [#allocation6], 1
    %s306 = scalar_lea.sflag [#allocation6], 1
    %307 = vsyncpa %s306, 1
    %308 = vsyncpa [#allocation4], 1
    %s309 = scalar_lea.sflag [#allocation4], 1
    %310 = vsyncpa %s309, 1

</llo_original>
